<compile_context>
chip_gen: v6e
topology: v6e:2x2x1
jax: 0.10.0
libtpu: 0.0.40
codegen_flags: <defaults>
</compile_context>

<pallas_src>
import jax
import jax.numpy as jnp
from jax.experimental import pallas as pl
from jax.experimental.pallas import tpu as pltpu


def _linear_head_kernel(x_ref, w_ref, b_ref, o_ref):
    # x_ref: (tm, H) VMEM   w_ref: (1, H) VMEM   b_ref: (1,) SMEM f32
    # o_ref: (1, tm) VMEM   (lane-dense output row of the slab)
    acc = jax.lax.dot_general(
        w_ref[...], x_ref[...],
        dimension_numbers=(((1,), (1,)), ((), ())),   # contract H with H -> (1, tm)
        preferred_element_type=jnp.float32,
        precision=jax.lax.Precision.HIGHEST,
    )
    o_ref[...] = (acc + b_ref[0]).astype(o_ref.dtype)


def _vmem_capacity_bytes(default=64 << 20):
    try:
        info = pltpu.get_tpu_info()
        cap = getattr(info, "vmem_capacity_bytes", None)
        if cap:
            return int(cap)
    except Exception:
        pass
    return default  # conservative: v7x per-TC VMEM


def _choose_row_tile(m, h, itemsize, *, per_buffer_bytes, min_steps=8, max_rows=4096):
    """128-aligned row tile (x sublanes + lane-dense out lanes) that fits the
    per-buffer VMEM budget and, when M allows, leaves >= min_steps grid steps
    so both v7x TensorCores get >= 2 pipelined steps each."""
    align = 128
    if m <= align:
        return m                                   # single full-extent block
    budget_rows = max(align, per_buffer_bytes // max(1, h * itemsize))
    tm = max(align, min((budget_rows // align) * align, max_rows))
    if m >= min_steps * align:
        steps_cap = max(align, ((m // min_steps) // align) * align)
        tm = min(tm, steps_cap)
    else:
        tm = align
    return tm


def linear_head(hidden_states, weight, bias, *, tm=None):
    """hidden_states: [B, S, H]; weight: [1, H] (torch nn.Linear layout); bias: [1].

    Returns logits: [B, S, 1] in hidden_states.dtype (f32 accumulation inside).
    """
    B, S, H = hidden_states.shape
    M = B * S
    x = hidden_states.reshape(M, H)                       # native dtype, no upcast
    w = weight.reshape(1, H).astype(hidden_states.dtype)  # lane-dense, resident
    b = bias.reshape(1).astype(jnp.float32)               # scalar bias -> SMEM

    x_itemsize = jnp.dtype(x.dtype).itemsize
    o_dtype = hidden_states.dtype
    o_itemsize = jnp.dtype(o_dtype).itemsize

    vmem_cap = _vmem_capacity_bytes()
    per_buffer = (16 << 20) if vmem_cap >= (100 << 20) else (8 << 20)  # v5e/v6e : v7x

    if tm is None:
        tm = _choose_row_tile(M, H, x_itemsize, per_buffer_bytes=per_buffer)
    grid_m = pl.cdiv(M, tm)

    # x stream: 3-deep pipeline when the grid is long enough, else double buffer.
    n_x_buffers = 2
    x_index_map = lambda i: (i, 0)
    x_spec = pl.BlockSpec((tm, H), x_index_map)
    if grid_m >= 4 and hasattr(pl, "Buffered"):
        try:
            x_spec = pl.BlockSpec((tm, H), x_index_map, pipeline_mode=pl.Buffered(3))
            n_x_buffers = 3
        except TypeError:
            pass  # older BlockSpec without pipeline_mode: keep default buffering

    # Actual VMEM footprint (with (8,128)-tile padding) + headroom.
    vmem_need = (n_x_buffers * tm * H * x_itemsize          # x tiles
                 + 2 * 8 * max(H, 128) * 4                  # weight block (padded)
                 + 2 * 8 * max(tm, 128) * 4)                # lane-dense out block
    vmem_limit = int(vmem_need * 1.25) + (4 << 20)
    vmem_limit = max(vmem_limit, 16 << 20)
    vmem_limit = min(vmem_limit, int(vmem_cap * 3) // 4)

    cost = pl.CostEstimate(
        flops=2 * M * H,
        transcendentals=0,
        bytes_accessed=(M * H * x_itemsize
                        + H * jnp.dtype(w.dtype).itemsize
                        + grid_m * tm * o_itemsize + 4),
    )

    out_slab = pl.pallas_call(
        _linear_head_kernel,
        out_shape=jax.ShapeDtypeStruct((grid_m, tm), o_dtype),
        grid_spec=pltpu.PrefetchScalarGridSpec(
            num_scalar_prefetch=0,
            grid=(grid_m,),
            in_specs=[
                x_spec,                                               # x row tile
                pl.BlockSpec((1, H), lambda i: (0, 0)),               # weight (resident)
                pl.BlockSpec(memory_space=pltpu.MemorySpace.SMEM),    # bias scalar
            ],
            out_specs=pl.BlockSpec((1, tm), lambda i: (i, 0)),        # lane-dense row
        ),
        compiler_params=pltpu.CompilerParams(
            dimension_semantics=("parallel",),
            vmem_limit_bytes=vmem_limit,
        ),
        cost_estimate=cost,
    )(x, w, b)

    # Drop the (< tm) padded tail of the last row block, restore [B, S, 1].
    return out_slab.reshape(-1)[:M].reshape(B, S, 1)


if __name__ == "__main__":
    # Small shapes consistent with the module: batch=2, seq=8, hidden=32.
    B, S, H = 2, 8, 32
    key = jax.random.PRNGKey(0)
    kx, kw = jax.random.split(key)

    hidden_states = jax.random.normal(kx, (B, S, H), dtype=jnp.float32)

    # Deterministic parameter init mirroring the module's __init__:
    # weight ~ N(0, 0.01), bias = 0.
    weight = 0.01 * jax.random.normal(kw, (1, H), dtype=jnp.float32)
    bias = jnp.zeros((1,), dtype=jnp.float32)

    logits = linear_head(hidden_states, weight, bias)
    logits = jax.block_until_ready(logits)

    # Reference check (plain JAX, elementwise f32 path).
    ref = (jnp.sum(hidden_states * weight.reshape(1, 1, H), axis=-1, keepdims=True)
           + bias.reshape(1, 1, 1))
    assert logits.shape == (B, S, 1), logits.shape
    assert jnp.allclose(logits, ref, atol=1e-5, rtol=1e-5), \
        float(jnp.max(jnp.abs(logits - ref)))

    print("KERNEL_OK")
</pallas_src>

<mosaic_0001>
module attributes {stable_mosaic.version = 11 : i64} {
  func.func @_linear_head_kernel(%arg0: i32, %arg1: memref<16x32xf32, #tpu.memory_space<vmem>>, %arg2: memref<1x32xf32, #tpu.memory_space<vmem>>, %arg3: memref<1xf32, #tpu.memory_space<smem>>, %arg4: memref<1x16xf32, #tpu.memory_space<vmem>>) attributes {dimension_semantics = [#tpu.dimension_semantics<parallel>], iteration_bounds = array<i64: 1>, scalar_prefetch = 0 : i64, scratch_operands = 0 : i64, tpu.core_type = #tpu.core_type<tc>, window_params = [{transform_indices = @transform_0, window_bounds = array<i64: 16, 32>}, {pipeline_mode = #tpu.pipeline_mode<synchronous>, transform_indices = @transform_1, window_bounds = array<i64: 1, 32>}, {transform_indices = @transform_2, window_bounds = array<i64: 1>}, {transform_indices = @transform_3, window_bounds = array<i64: 1, 16>}]} {
    %c0 = arith.constant 0 : index
    %c0_0 = arith.constant 0 : index
    %0 = vector.load %arg2[%c0, %c0_0] : memref<1x32xf32, #tpu.memory_space<vmem>>, vector<1x32xf32>
    %c0_1 = arith.constant 0 : index
    %c0_2 = arith.constant 0 : index
    %1 = vector.load %arg1[%c0_1, %c0_2] : memref<16x32xf32, #tpu.memory_space<vmem>>, vector<16x32xf32>
    %cst = arith.constant dense<0.000000e+00> : vector<1x16xf32>
    %2 = tpu.matmul %0, %1, %cst {dimension_numbers = #tpu.dot_dimension_numbers<[1], [1], [0], [0], [0, 0, 1, 0], [], []>, precision = #tpu.contract_precision<fp32>} : vector<1x32xf32>, vector<16x32xf32>, vector<1x16xf32> -> vector<1x16xf32>
    %c0_3 = arith.constant 0 : index
    %3 = memref.load %arg3[%c0_3] : memref<1xf32, #tpu.memory_space<smem>>
    %4 = vector.broadcast %3 : f32 to vector<1x16xf32>
    %5 = arith.addf %2, %4 : vector<1x16xf32>
    %c0_4 = arith.constant 0 : index
    %c0_5 = arith.constant 0 : index
    %6 = vector.load %arg4[%c0_4, %c0_5] : memref<1x16xf32, #tpu.memory_space<vmem>>, vector<1x16xf32>
    tpu.vector_store %arg4[%c0_4, %c0_5], %5 {strides = array<i32>} : memref<1x16xf32, #tpu.memory_space<vmem>>, vector<1x16xf32>,
    return
  }
  func.func @transform_0(%arg0: i32) -> (i32, i32) {
    %c0_i32 = arith.constant 0 : i32
    %c0_i32_0 = arith.constant 0 : i32
    return %arg0, %c0_i32 : i32, i32
  }
  func.func @transform_1(%arg0: i32) -> (i32, i32) {
    %c0_i32 = arith.constant 0 : i32
    %c0_i32_0 = arith.constant 0 : i32
    %c0_i32_1 = arith.constant 0 : i32
    return %c0_i32, %c0_i32_0 : i32, i32
  }
  func.func @transform_2(%arg0: i32) -> i32 {
    %c0_i32 = arith.constant 0 : i32
    %c0_i32_0 = arith.constant 0 : i32
    return %c0_i32 : i32
  }
  func.func @transform_3(%arg0: i32) -> (i32, i32) {
    %c0_i32 = arith.constant 0 : i32
    %c0_i32_0 = arith.constant 0 : i32
    return %arg0, %c0_i32 : i32, i32
  }
}

</mosaic_0001>

<llo_original>
// kernel: tpu_custom_call.1
$region0: #{tpu_custom_call.1}
  #allocation0 [shape = 'u32[]', space=smem, size = 0x4, offset = 0x4, fixed_abs, tag = 'smem constant byte address 0x4 - core index']
  #allocation1 [shape = 'u32[144,128]{1,0:T(1,128)}', space=vmem, size = 0x12000, scoped, tag = 'internal scratch']
  #allocation2 [shape = 'f32[1]{0:T(128)S(6)}', space=smem, size = 0x200, scoped, tag = 'scoped memory for tpu_custom_call.1']
  %s0 = inlined_call_operand.hbm [shape: f32[16,32], index: 0, kind: input, shape index: {}]
  %s1 = inlined_call_operand.vmem [shape: f32[1,32], index: 1, kind: input, shape index: {}]
  %s2 = inlined_call_operand.<no memory space> [shape: f32[1], index: 2, kind: input, shape index: {}]
  %s3 = inlined_call_operand.hbm [shape: f32[1,16], index: 3, kind: output, shape index: {}]
  %s4 = sld [smem:[#allocation0]]
  $region26: #{tpu_custom_call.1} parent=0
    _
  %s6 = ssub.s32 1, %s4
  %s7 = scalar_select 0, %s6, %s4
  %8 = sst [smem:[#allocation2]] %s2
  $region1: #{tpu_custom_call.1} parent=0
    #allocation3 [shape = 'u8[8192]{0}', space=vmem, size = 0x2000, scoped, tag = 'input window, operand 0, single buffered']
    #allocation4 [shape = 's32[1]{0}', space=sflag, size = 0x4, scoped, tag = 'scoped memory for tpu_custom_call.1']
    #allocation5 [shape = 's32[1]{0}', space=sflag, size = 0x4, scoped, tag = 'scoped memory for tpu_custom_call.1']
    #allocation6 [shape = 'u8[512]{0}', space=vmem, size = 0x400, scoped, tag = 'output window, operand 0, single buffered']
    %9 = vsyncpa [#allocation4], 0
    %10 = vsyncpa [#allocation5], 0
    // Predicated region
    $region2: #{tpu_custom_call.1} parent=1 // pred_check
      _
    $region3: #{tpu_custom_call.1} parent=1 // pred_check_branch
      %12 = sbr.rel (0) target = $region5
    $region4: #{tpu_custom_call.1} parent=1 // pred_region
      %s14 = ssub.s32 256, 256
      %15 = vsyncadd [#allocation4], %s14
      %s16 = sshll.u32 [#allocation3], 4
      %s17 = int_to_ptr.vmem [resolvable:$true] %s16
      %22 = dma.hbm_to_vmem [thread:$0]  %s0, 256, %s17, [#allocation4], 128, 128, 8
    $region5: #{tpu_custom_call.1} parent=1 // pred_fallthru
      _
    // Predicated region
    $region6: #{tpu_custom_call.1} parent=1 // pred_check
      _
    $region7: #{tpu_custom_call.1} parent=1 // pred_check_branch
      %24 = sbr.rel (0) target = $region9
    $region8: #{tpu_custom_call.1} parent=1 // pred_region
      _
    $region9: #{tpu_custom_call.1} parent=1 // pred_fallthru
      _
    // Predicated region
    $region10: #{tpu_custom_call.1} parent=1 // pred_check
      _
    $region11: #{tpu_custom_call.1} parent=1 // pred_check_branch
      %26 = sbr.rel (0) target = $region13
    $region12: #{tpu_custom_call.1} parent=1 // pred_region
      _
    $region13: #{tpu_custom_call.1} parent=1 // pred_fallthru
      _
    // Predicated region
    $region14: #{tpu_custom_call.1} parent=1 // pred_check
      _
    $region15: #{tpu_custom_call.1} parent=1 // pred_check_branch
      %28 = sbr.rel (0) target = $region17
    $region16: #{tpu_custom_call.1} parent=1 // pred_region
      %29 = dma.done [#allocation4], 256
    $region17: #{tpu_custom_call.1} parent=1 // pred_fallthru
      _
    %v30 = vld [vmem:[%s1] sm:$0x1]
    %v31 = vld [vmem:[#allocation3] sm:$0xff]
    %v32 = vld [vmem:[#allocation3 + $0x8] sm:$0xff]
    %s33 = sld [smem:[#allocation2]]
    %v34 = vstv %s33
    %vm35 = vcmask 261120
    %v37 = vsel %vm35, %v30, 0
    %v40 = vsel %vm35, %v31, 0
    %v43 = vsel %vm35, %v32, 0
    %45 = vmatprep.subr.mxu0 0.0
    %46 = vmatpush1.xpose.msra.mxu0 0.0
    %47 = vmatprep.subr.mxu0 0.0
    %48 = vmatpush1.xpose.msra.mxu0 0.0
    %49 = vmatprep.subr.mxu0 0.0
    %50 = vmatpush1.xpose.msra.mxu0 0.0
    %51 = vmatprep.subr.mxu0 0.0
    %52 = vmatpush1.xpose.msra.mxu0 0.0
    %53 = vmatprep.subr.mxu0 0.0
    %54 = vmatpush1.xpose.msra.mxu0 0.0
    %55 = vmatprep.subr.mxu0 0.0
    %56 = vmatpush1.xpose.msra.mxu0 0.0
    %57 = vmatprep.subr.mxu0 0.0
    %58 = vmatpush1.xpose.msra.mxu0 0.0
    %59 = vmatprep.subr.mxu0 0.0
    %60 = vmatpush1.xpose.msra.mxu0 0.0
    %61 = vmatprep.subr.mxu0 0.0
    %62 = vmatpush1.xpose.msra.mxu0 0.0
    %63 = vmatprep.subr.mxu0 0.0
    %64 = vmatpush1.xpose.msra.mxu0 0.0
    %65 = vmatprep.subr.mxu0 0.0
    %66 = vmatpush1.xpose.msra.mxu0 0.0
    %67 = vmatprep.subr.mxu0 0.0
    %68 = vmatpush1.xpose.msra.mxu0 0.0
    %69 = vmatprep.subr.mxu0 0.0
    %70 = vmatpush1.xpose.msra.mxu0 0.0
    %71 = vmatprep.subr.mxu0 0.0
    %72 = vmatpush1.xpose.msra.mxu0 0.0
    %73 = vmatprep.subr.mxu0 0.0
    %v74 = vand.u32 %v43, 4294901760
    %75 = vmatpush1.xpose.msra.mxu0 %v74
    %76 = vmatprep.subr.mxu0 0.0
    %v77 = vand.u32 %v40, 4294901760
    %78 = vmatpush1.xpose.msra.mxu0 %v77
    %79 = vmatprep.subr.mxu0 0.0
    %80 = vmatpush2.xpose.msra.mxu0 0.0
    %81 = vmatprep.subr.mxu0 0.0
    %82 = vmatpush2.xpose.msra.mxu0 0.0
    %83 = vmatprep.subr.mxu0 0.0
    %84 = vmatpush2.xpose.msra.mxu0 0.0
    %85 = vmatprep.subr.mxu0 0.0
    %86 = vmatpush2.xpose.msra.mxu0 0.0
    %87 = vmatprep.subr.mxu0 0.0
    %88 = vmatpush2.xpose.msra.mxu0 0.0
    %89 = vmatprep.subr.mxu0 0.0
    %90 = vmatpush2.xpose.msra.mxu0 0.0
    %91 = vmatprep.subr.mxu0 0.0
    %92 = vmatpush2.xpose.msra.mxu0 0.0
    %93 = vmatprep.subr.mxu0 0.0
    %94 = vmatpush2.xpose.msra.mxu0 0.0
    %95 = vmatprep.subr.mxu0 0.0
    %96 = vmatpush2.xpose.msra.mxu0 0.0
    %97 = vmatprep.subr.mxu0 0.0
    %98 = vmatpush2.xpose.msra.mxu0 0.0
    %99 = vmatprep.subr.mxu0 0.0
    %100 = vmatpush2.xpose.msra.mxu0 0.0
    %101 = vmatprep.subr.mxu0 0.0
    %102 = vmatpush2.xpose.msra.mxu0 0.0
    %103 = vmatprep.subr.mxu0 0.0
    %104 = vmatpush2.xpose.msra.mxu0 0.0
    %105 = vmatprep.subr.mxu0 0.0
    %106 = vmatpush2.xpose.msra.mxu0 0.0
    %107 = vmatprep.subr.mxu0 0.0
    %108 = vmatpush2.xpose.msra.mxu0 0.0
    %109 = vmatprep.subr.mxu0 0.0
    %110 = vmatpush2.xpose.msra.mxu0 0.0
    %111 = vmatprep.mubr.f32.mxu0 0.0
    %v112 = vand.u32 %v37, 4294901760
    %v113 = vsub.f32 %v37, %v112
    %v114 = vand.u32 %v113, 4294901760
    %v115 = vsub.f32 %v113, %v114
    %v116 = vand.u32 %v115, 4294901760
    %117 = vmatmul.mubr.f32.gmra.mxu0 %v116
    %v118 = vpop.f32.mrf.mxu0
    %v119 = vadd.f32 %v34, %v118
    %v120 = vpop.f32.mrf.mxu0
    %121 = vdwg.mxu0
    %122 = vmatprep.subr.mxu0 0.0
    %123 = vmatpush1.xpose.msra.mxu0 0.0
    %124 = vmatprep.subr.mxu0 0.0
    %125 = vmatpush1.xpose.msra.mxu0 0.0
    %126 = vmatprep.subr.mxu0 0.0
    %127 = vmatpush1.xpose.msra.mxu0 0.0
    %128 = vmatprep.subr.mxu0 0.0
    %129 = vmatpush1.xpose.msra.mxu0 0.0
    %130 = vmatprep.subr.mxu0 0.0
    %131 = vmatpush1.xpose.msra.mxu0 0.0
    %132 = vmatprep.subr.mxu0 0.0
    %133 = vmatpush1.xpose.msra.mxu0 0.0
    %134 = vmatprep.subr.mxu0 0.0
    %135 = vmatpush1.xpose.msra.mxu0 0.0
    %136 = vmatprep.subr.mxu0 0.0
    %137 = vmatpush1.xpose.msra.mxu0 0.0
    %138 = vmatprep.subr.mxu0 0.0
    %139 = vmatpush1.xpose.msra.mxu0 0.0
    %140 = vmatprep.subr.mxu0 0.0
    %141 = vmatpush1.xpose.msra.mxu0 0.0
    %142 = vmatprep.subr.mxu0 0.0
    %143 = vmatpush1.xpose.msra.mxu0 0.0
    %144 = vmatprep.subr.mxu0 0.0
    %145 = vmatpush1.xpose.msra.mxu0 0.0
    %146 = vmatprep.subr.mxu0 0.0
    %147 = vmatpush1.xpose.msra.mxu0 0.0
    %148 = vmatprep.subr.mxu0 0.0
    %149 = vmatpush1.xpose.msra.mxu0 0.0
    %150 = vmatprep.subr.mxu0 0.0
    %v151 = vand.u32 %v43, 4294901760
    %v152 = vsub.f32 %v43, %v151
    %v153 = vand.u32 %v152, 4294901760
    %v154 = vsub.f32 %v152, %v153
    %v155 = vand.u32 %v154, 4294901760
    %156 = vmatpush1.xpose.msra.mxu0 %v155
    %157 = vmatprep.subr.mxu0 0.0
    %v158 = vand.u32 %v40, 4294901760
    %v159 = vsub.f32 %v40, %v158
    %v160 = vand.u32 %v159, 4294901760
    %v161 = vsub.f32 %v159, %v160
    %v162 = vand.u32 %v161, 4294901760
    %163 = vmatpush1.xpose.msra.mxu0 %v162
    %164 = vmatprep.subr.mxu0 0.0
    %165 = vmatpush2.xpose.msra.mxu0 0.0
    %166 = vmatprep.subr.mxu0 0.0
    %167 = vmatpush2.xpose.msra.mxu0 0.0
    %168 = vmatprep.subr.mxu0 0.0
    %169 = vmatpush2.xpose.msra.mxu0 0.0
    %170 = vmatprep.subr.mxu0 0.0
    %171 = vmatpush2.xpose.msra.mxu0 0.0
    %172 = vmatprep.subr.mxu0 0.0
    %173 = vmatpush2.xpose.msra.mxu0 0.0
    %174 = vmatprep.subr.mxu0 0.0
    %175 = vmatpush2.xpose.msra.mxu0 0.0
    %176 = vmatprep.subr.mxu0 0.0
    %177 = vmatpush2.xpose.msra.mxu0 0.0
    %178 = vmatprep.subr.mxu0 0.0
    %179 = vmatpush2.xpose.msra.mxu0 0.0
    %180 = vmatprep.subr.mxu0 0.0
    %181 = vmatpush2.xpose.msra.mxu0 0.0
    %182 = vmatprep.subr.mxu0 0.0
    %183 = vmatpush2.xpose.msra.mxu0 0.0
    %184 = vmatprep.subr.mxu0 0.0
    %185 = vmatpush2.xpose.msra.mxu0 0.0
    %186 = vmatprep.subr.mxu0 0.0
    %187 = vmatpush2.xpose.msra.mxu0 0.0
    %188 = vmatprep.subr.mxu0 0.0
    %189 = vmatpush2.xpose.msra.mxu0 0.0
    %190 = vmatprep.subr.mxu0 0.0
    %191 = vmatpush2.xpose.msra.mxu0 0.0
    %192 = vmatprep.subr.mxu0 0.0
    %193 = vmatpush2.xpose.msra.mxu0 0.0
    %194 = vmatprep.subr.mxu0 0.0
    %195 = vmatpush2.xpose.msra.mxu0 0.0
    %196 = vmatprep.mubr.f32.mxu0 0.0
    %v197 = vand.u32 %v37, 4294901760
    %198 = vmatmul.mubr.f32.gmra.mxu0 %v197
    %v199 = vpop.f32.mrf.mxu0
    %v200 = vadd.f32 %v119, %v199
    %v201 = vpop.f32.mrf.mxu0
    %202 = vdwg.mxu0
    %203 = vmatprep.subr.mxu0 0.0
    %204 = vmatpush1.xpose.msra.mxu0 0.0
    %205 = vmatprep.subr.mxu0 0.0
    %206 = vmatpush1.xpose.msra.mxu0 0.0
    %207 = vmatprep.subr.mxu0 0.0
    %208 = vmatpush1.xpose.msra.mxu0 0.0
    %209 = vmatprep.subr.mxu0 0.0
    %210 = vmatpush1.xpose.msra.mxu0 0.0
    %211 = vmatprep.subr.mxu0 0.0
    %212 = vmatpush1.xpose.msra.mxu0 0.0
    %213 = vmatprep.subr.mxu0 0.0
    %214 = vmatpush1.xpose.msra.mxu0 0.0
    %215 = vmatprep.subr.mxu0 0.0
    %216 = vmatpush1.xpose.msra.mxu0 0.0
    %217 = vmatprep.subr.mxu0 0.0
    %218 = vmatpush1.xpose.msra.mxu0 0.0
    %219 = vmatprep.subr.mxu0 0.0
    %220 = vmatpush1.xpose.msra.mxu0 0.0
    %221 = vmatprep.subr.mxu0 0.0
    %222 = vmatpush1.xpose.msra.mxu0 0.0
    %223 = vmatprep.subr.mxu0 0.0
    %224 = vmatpush1.xpose.msra.mxu0 0.0
    %225 = vmatprep.subr.mxu0 0.0
    %226 = vmatpush1.xpose.msra.mxu0 0.0
    %227 = vmatprep.subr.mxu0 0.0
    %228 = vmatpush1.xpose.msra.mxu0 0.0
    %229 = vmatprep.subr.mxu0 0.0
    %230 = vmatpush1.xpose.msra.mxu0 0.0
    %231 = vmatprep.subr.mxu0 0.0
    %v232 = vand.u32 %v43, 4294901760
    %v233 = vsub.f32 %v43, %v232
    %234 = vmatpush1.xpose.msra.mxu0 %v233
    %235 = vmatprep.subr.mxu0 0.0
    %v236 = vand.u32 %v40, 4294901760
    %v237 = vsub.f32 %v40, %v236
    %238 = vmatpush1.xpose.msra.mxu0 %v237
    %239 = vmatprep.subr.mxu0 0.0
    %240 = vmatpush2.xpose.msra.mxu0 0.0
    %241 = vmatprep.subr.mxu0 0.0
    %242 = vmatpush2.xpose.msra.mxu0 0.0
    %243 = vmatprep.subr.mxu0 0.0
    %244 = vmatpush2.xpose.msra.mxu0 0.0
    %245 = vmatprep.subr.mxu0 0.0
    %246 = vmatpush2.xpose.msra.mxu0 0.0
    %247 = vmatprep.subr.mxu0 0.0
    %248 = vmatpush2.xpose.msra.mxu0 0.0
    %249 = vmatprep.subr.mxu0 0.0
    %250 = vmatpush2.xpose.msra.mxu0 0.0
    %251 = vmatprep.subr.mxu0 0.0
    %252 = vmatpush2.xpose.msra.mxu0 0.0
    %253 = vmatprep.subr.mxu0 0.0
    %254 = vmatpush2.xpose.msra.mxu0 0.0
    %255 = vmatprep.subr.mxu0 0.0
    %256 = vmatpush2.xpose.msra.mxu0 0.0
    %257 = vmatprep.subr.mxu0 0.0
    %258 = vmatpush2.xpose.msra.mxu0 0.0
    %259 = vmatprep.subr.mxu0 0.0
    %260 = vmatpush2.xpose.msra.mxu0 0.0
    %261 = vmatprep.subr.mxu0 0.0
    %262 = vmatpush2.xpose.msra.mxu0 0.0
    %263 = vmatprep.subr.mxu0 0.0
    %264 = vmatpush2.xpose.msra.mxu0 0.0
    %265 = vmatprep.subr.mxu0 0.0
    %266 = vmatpush2.xpose.msra.mxu0 0.0
    %267 = vmatprep.subr.mxu0 0.0
    %268 = vmatpush2.xpose.msra.mxu0 0.0
    %269 = vmatprep.subr.mxu0 0.0
    %270 = vmatpush2.xpose.msra.mxu0 0.0
    %271 = vmatprep.mubr.f32.mxu0 0.0
    %v272 = vand.u32 %v37, 4294901760
    %v273 = vsub.f32 %v37, %v272
    %274 = vmatmul.mubr.f32.gmra.mxu0 %v273
    %v275 = vpop.f32.mrf.mxu0
    %v276 = vadd.f32 %v200, %v275
    %v277 = vpop.f32.mrf.mxu0
    %278 = vdwg.mxu0
    %279 = vmatprep.subr.mxu0 0.0
    %280 = vmatpush1.xpose.msra.mxu0 0.0
    %281 = vmatprep.subr.mxu0 0.0
    %282 = vmatpush1.xpose.msra.mxu0 0.0
    %283 = vmatprep.subr.mxu0 0.0
    %284 = vmatpush1.xpose.msra.mxu0 0.0
    %285 = vmatprep.subr.mxu0 0.0
    %286 = vmatpush1.xpose.msra.mxu0 0.0
    %287 = vmatprep.subr.mxu0 0.0
    %288 = vmatpush1.xpose.msra.mxu0 0.0
    %289 = vmatprep.subr.mxu0 0.0
    %290 = vmatpush1.xpose.msra.mxu0 0.0
    %291 = vmatprep.subr.mxu0 0.0
    %292 = vmatpush1.xpose.msra.mxu0 0.0
    %293 = vmatprep.subr.mxu0 0.0
    %294 = vmatpush1.xpose.msra.mxu0 0.0
    %295 = vmatprep.subr.mxu0 0.0
    %296 = vmatpush1.xpose.msra.mxu0 0.0
    %297 = vmatprep.subr.mxu0 0.0
    %298 = vmatpush1.xpose.msra.mxu0 0.0
    %299 = vmatprep.subr.mxu0 0.0
    %300 = vmatpush1.xpose.msra.mxu0 0.0
    %301 = vmatprep.subr.mxu0 0.0
    %302 = vmatpush1.xpose.msra.mxu0 0.0
    %303 = vmatprep.subr.mxu0 0.0
    %304 = vmatpush1.xpose.msra.mxu0 0.0
    %305 = vmatprep.subr.mxu0 0.0
    %306 = vmatpush1.xpose.msra.mxu0 0.0
    %307 = vmatprep.subr.mxu0 0.0
    %v308 = vand.u32 %v43, 4294901760
    %309 = vmatpush1.xpose.msra.mxu0 %v308
    %310 = vmatprep.subr.mxu0 0.0
    %v311 = vand.u32 %v40, 4294901760
    %312 = vmatpush1.xpose.msra.mxu0 %v311
    %313 = vmatprep.subr.mxu0 0.0
    %314 = vmatpush2.xpose.msra.mxu0 0.0
    %315 = vmatprep.subr.mxu0 0.0
    %316 = vmatpush2.xpose.msra.mxu0 0.0
    %317 = vmatprep.subr.mxu0 0.0
    %318 = vmatpush2.xpose.msra.mxu0 0.0
    %319 = vmatprep.subr.mxu0 0.0
    %320 = vmatpush2.xpose.msra.mxu0 0.0
    %321 = vmatprep.subr.mxu0 0.0
    %322 = vmatpush2.xpose.msra.mxu0 0.0
    %323 = vmatprep.subr.mxu0 0.0
    %324 = vmatpush2.xpose.msra.mxu0 0.0
    %325 = vmatprep.subr.mxu0 0.0
    %326 = vmatpush2.xpose.msra.mxu0 0.0
    %327 = vmatprep.subr.mxu0 0.0
    %328 = vmatpush2.xpose.msra.mxu0 0.0
    %329 = vmatprep.subr.mxu0 0.0
    %330 = vmatpush2.xpose.msra.mxu0 0.0
    %331 = vmatprep.subr.mxu0 0.0
    %332 = vmatpush2.xpose.msra.mxu0 0.0
    %333 = vmatprep.subr.mxu0 0.0
    %334 = vmatpush2.xpose.msra.mxu0 0.0
    %335 = vmatprep.subr.mxu0 0.0
    %336 = vmatpush2.xpose.msra.mxu0 0.0
    %337 = vmatprep.subr.mxu0 0.0
    %338 = vmatpush2.xpose.msra.mxu0 0.0
    %339 = vmatprep.subr.mxu0 0.0
    %340 = vmatpush2.xpose.msra.mxu0 0.0
    %341 = vmatprep.subr.mxu0 0.0
    %342 = vmatpush2.xpose.msra.mxu0 0.0
    %343 = vmatprep.subr.mxu0 0.0
    %344 = vmatpush2.xpose.msra.mxu0 0.0
    %345 = vmatprep.mubr.f32.mxu0 0.0
    %v346 = vand.u32 %v37, 4294901760
    %v347 = vsub.f32 %v37, %v346
    %v348 = vand.u32 %v347, 4294901760
    %349 = vmatmul.mubr.f32.gmra.mxu0 %v348
    %v350 = vpop.f32.mrf.mxu0
    %v351 = vadd.f32 %v276, %v350
    %v352 = vpop.f32.mrf.mxu0
    %353 = vdwg.mxu0
    %354 = vmatprep.subr.mxu0 0.0
    %355 = vmatpush1.xpose.msra.mxu0 0.0
    %356 = vmatprep.subr.mxu0 0.0
    %357 = vmatpush1.xpose.msra.mxu0 0.0
    %358 = vmatprep.subr.mxu0 0.0
    %359 = vmatpush1.xpose.msra.mxu0 0.0
    %360 = vmatprep.subr.mxu0 0.0
    %361 = vmatpush1.xpose.msra.mxu0 0.0
    %362 = vmatprep.subr.mxu0 0.0
    %363 = vmatpush1.xpose.msra.mxu0 0.0
    %364 = vmatprep.subr.mxu0 0.0
    %365 = vmatpush1.xpose.msra.mxu0 0.0
    %366 = vmatprep.subr.mxu0 0.0
    %367 = vmatpush1.xpose.msra.mxu0 0.0
    %368 = vmatprep.subr.mxu0 0.0
    %369 = vmatpush1.xpose.msra.mxu0 0.0
    %370 = vmatprep.subr.mxu0 0.0
    %371 = vmatpush1.xpose.msra.mxu0 0.0
    %372 = vmatprep.subr.mxu0 0.0
    %373 = vmatpush1.xpose.msra.mxu0 0.0
    %374 = vmatprep.subr.mxu0 0.0
    %375 = vmatpush1.xpose.msra.mxu0 0.0
    %376 = vmatprep.subr.mxu0 0.0
    %377 = vmatpush1.xpose.msra.mxu0 0.0
    %378 = vmatprep.subr.mxu0 0.0
    %379 = vmatpush1.xpose.msra.mxu0 0.0
    %380 = vmatprep.subr.mxu0 0.0
    %381 = vmatpush1.xpose.msra.mxu0 0.0
    %382 = vmatprep.subr.mxu0 0.0
    %v383 = vand.u32 %v43, 4294901760
    %v384 = vsub.f32 %v43, %v383
    %v385 = vand.u32 %v384, 4294901760
    %386 = vmatpush1.xpose.msra.mxu0 %v385
    %387 = vmatprep.subr.mxu0 0.0
    %v388 = vand.u32 %v40, 4294901760
    %v389 = vsub.f32 %v40, %v388
    %v390 = vand.u32 %v389, 4294901760
    %391 = vmatpush1.xpose.msra.mxu0 %v390
    %392 = vmatprep.subr.mxu0 0.0
    %393 = vmatpush2.xpose.msra.mxu0 0.0
    %394 = vmatprep.subr.mxu0 0.0
    %395 = vmatpush2.xpose.msra.mxu0 0.0
    %396 = vmatprep.subr.mxu0 0.0
    %397 = vmatpush2.xpose.msra.mxu0 0.0
    %398 = vmatprep.subr.mxu0 0.0
    %399 = vmatpush2.xpose.msra.mxu0 0.0
    %400 = vmatprep.subr.mxu0 0.0
    %401 = vmatpush2.xpose.msra.mxu0 0.0
    %402 = vmatprep.subr.mxu0 0.0
    %403 = vmatpush2.xpose.msra.mxu0 0.0
    %404 = vmatprep.subr.mxu0 0.0
    %405 = vmatpush2.xpose.msra.mxu0 0.0
    %406 = vmatprep.subr.mxu0 0.0
    %407 = vmatpush2.xpose.msra.mxu0 0.0
    %408 = vmatprep.subr.mxu0 0.0
    %409 = vmatpush2.xpose.msra.mxu0 0.0
    %410 = vmatprep.subr.mxu0 0.0
    %411 = vmatpush2.xpose.msra.mxu0 0.0
    %412 = vmatprep.subr.mxu0 0.0
    %413 = vmatpush2.xpose.msra.mxu0 0.0
    %414 = vmatprep.subr.mxu0 0.0
    %415 = vmatpush2.xpose.msra.mxu0 0.0
    %416 = vmatprep.subr.mxu0 0.0
    %417 = vmatpush2.xpose.msra.mxu0 0.0
    %418 = vmatprep.subr.mxu0 0.0
    %419 = vmatpush2.xpose.msra.mxu0 0.0
    %420 = vmatprep.subr.mxu0 0.0
    %421 = vmatpush2.xpose.msra.mxu0 0.0
    %422 = vmatprep.subr.mxu0 0.0
    %423 = vmatpush2.xpose.msra.mxu0 0.0
    %424 = vmatprep.mubr.f32.mxu0 0.0
    %v425 = vand.u32 %v37, 4294901760
    %426 = vmatmul.mubr.f32.gmra.mxu0 %v425
    %v427 = vpop.f32.mrf.mxu0
    %v428 = vadd.f32 %v351, %v427
    %v429 = vpop.f32.mrf.mxu0
    %430 = vdwg.mxu0
    %431 = vmatprep.subr.mxu0 0.0
    %432 = vmatpush1.xpose.msra.mxu0 0.0
    %433 = vmatprep.subr.mxu0 0.0
    %434 = vmatpush1.xpose.msra.mxu0 0.0
    %435 = vmatprep.subr.mxu0 0.0
    %436 = vmatpush1.xpose.msra.mxu0 0.0
    %437 = vmatprep.subr.mxu0 0.0
    %438 = vmatpush1.xpose.msra.mxu0 0.0
    %439 = vmatprep.subr.mxu0 0.0
    %440 = vmatpush1.xpose.msra.mxu0 0.0
    %441 = vmatprep.subr.mxu0 0.0
    %442 = vmatpush1.xpose.msra.mxu0 0.0
    %443 = vmatprep.subr.mxu0 0.0
    %444 = vmatpush1.xpose.msra.mxu0 0.0
    %445 = vmatprep.subr.mxu0 0.0
    %446 = vmatpush1.xpose.msra.mxu0 0.0
    %447 = vmatprep.subr.mxu0 0.0
    %448 = vmatpush1.xpose.msra.mxu0 0.0
    %449 = vmatprep.subr.mxu0 0.0
    %450 = vmatpush1.xpose.msra.mxu0 0.0
    %451 = vmatprep.subr.mxu0 0.0
    %452 = vmatpush1.xpose.msra.mxu0 0.0
    %453 = vmatprep.subr.mxu0 0.0
    %454 = vmatpush1.xpose.msra.mxu0 0.0
    %455 = vmatprep.subr.mxu0 0.0
    %456 = vmatpush1.xpose.msra.mxu0 0.0
    %457 = vmatprep.subr.mxu0 0.0
    %458 = vmatpush1.xpose.msra.mxu0 0.0
    %459 = vmatprep.subr.mxu0 0.0
    %v460 = vand.u32 %v43, 4294901760
    %461 = vmatpush1.xpose.msra.mxu0 %v460
    %462 = vmatprep.subr.mxu0 0.0
    %v463 = vand.u32 %v40, 4294901760
    %464 = vmatpush1.xpose.msra.mxu0 %v463
    %465 = vmatprep.subr.mxu0 0.0
    %466 = vmatpush2.xpose.msra.mxu0 0.0
    %467 = vmatprep.subr.mxu0 0.0
    %468 = vmatpush2.xpose.msra.mxu0 0.0
    %469 = vmatprep.subr.mxu0 0.0
    %470 = vmatpush2.xpose.msra.mxu0 0.0
    %471 = vmatprep.subr.mxu0 0.0
    %472 = vmatpush2.xpose.msra.mxu0 0.0
    %473 = vmatprep.subr.mxu0 0.0
    %474 = vmatpush2.xpose.msra.mxu0 0.0
    %475 = vmatprep.subr.mxu0 0.0
    %476 = vmatpush2.xpose.msra.mxu0 0.0
    %477 = vmatprep.subr.mxu0 0.0
    %478 = vmatpush2.xpose.msra.mxu0 0.0
    %479 = vmatprep.subr.mxu0 0.0
    %480 = vmatpush2.xpose.msra.mxu0 0.0
    %481 = vmatprep.subr.mxu0 0.0
    %482 = vmatpush2.xpose.msra.mxu0 0.0
    %483 = vmatprep.subr.mxu0 0.0
    %484 = vmatpush2.xpose.msra.mxu0 0.0
    %485 = vmatprep.subr.mxu0 0.0
    %486 = vmatpush2.xpose.msra.mxu0 0.0
    %487 = vmatprep.subr.mxu0 0.0
    %488 = vmatpush2.xpose.msra.mxu0 0.0
    %489 = vmatprep.subr.mxu0 0.0
    %490 = vmatpush2.xpose.msra.mxu0 0.0
    %491 = vmatprep.subr.mxu0 0.0
    %492 = vmatpush2.xpose.msra.mxu0 0.0
    %493 = vmatprep.subr.mxu0 0.0
    %494 = vmatpush2.xpose.msra.mxu0 0.0
    %495 = vmatprep.subr.mxu0 0.0
    %496 = vmatpush2.xpose.msra.mxu0 0.0
    %497 = vmatprep.mubr.f32.mxu0 0.0
    %v498 = vand.u32 %v37, 4294901760
    %499 = vmatmul.mubr.f32.gmra.mxu0 %v498
    %v500 = vpop.f32.mrf.mxu0
    %v501 = vadd.f32 %v428, %v500
    %v502 = vpop.f32.mrf.mxu0
    %503 = vdwg.mxu0
    %vm504 = vcmask 122880
    %505 = vst.msk [vmem:[#allocation6] sm:$0x1] %vm504, %v501
    // Predicated region
    $region18: #{tpu_custom_call.1} parent=1 // pred_check
      _
    $region19: #{tpu_custom_call.1} parent=1 // pred_check_branch
      %507 = sbr.rel (0) target = $region21
    $region20: #{tpu_custom_call.1} parent=1 // pred_region
      %s509 = ssub.s32 16, 16
      %510 = vsyncadd [#allocation5], %s509
      %s512 = sshll.u32 [#allocation6], 4
      %s513 = int_to_ptr.vmem [resolvable:$true] %s512
      %515 = dma.vmem_to_hbm [thread:$0]  %s513, 16, %s3, [#allocation5]
    $region21: #{tpu_custom_call.1} parent=1 // pred_fallthru
      _
    // Predicated region
    $region22: #{tpu_custom_call.1} parent=1 // pred_check
      _
    $region23: #{tpu_custom_call.1} parent=1 // pred_check_branch
      %517 = sbr.rel (0) target = $region25
    $region24: #{tpu_custom_call.1} parent=1 // pred_region
      %518 = dma.done [#allocation5], 16
    $region25: #{tpu_custom_call.1} parent=1 // pred_fallthru
      _
    %519 = vsyncpa [#allocation4], 1
    %520 = vsyncpa [#allocation5], 1

</llo_original>
